<compile_context>
chip_gen: v6e
topology: v6e:2x2x1
jax: 0.10.0
libtpu: 0.0.40
codegen_flags: <defaults>
</compile_context>

<pallas_src>
import functools

import jax
import jax.numpy as jnp
from jax.experimental import pallas as pl
from jax.experimental.pallas import tpu as pltpu


def _round_up(n, m):
    return ((n + m - 1) // m) * m


# ---------------------------------------------------------------------------
# Pallas kernel: fused (a_linear + spectral s_linear) matmul + bias
# ---------------------------------------------------------------------------
def _spectral_linear_kernel(sigma_ref, x_ref, w_ref, b_ref, o_ref, *, a_dim):
    # sigma_ref : SMEM (1, 1) f32 -- spectral-norm estimate of Ws
    # x_ref     : VMEM (TM, K)    -- K = in_features (full contraction dim)
    # w_ref     : VMEM (K, TN)    -- rows [0:a_dim) = Wa^T, rows [a_dim:) = Ws^T
    # b_ref     : VMEM (1, TN) f32
    # o_ref     : VMEM (TM, TN)
    inv_sigma = 1.0 / jnp.maximum(sigma_ref[0, 0], 1e-12)      # eps guard

    # Scale only the spectral-path columns of x by 1/sigma, in f32 (v5e has no
    # bf16 VPU), then cast to the MXU input dtype:
    #   (xs / sigma) @ Ws^T == xs @ (Ws / sigma)^T
    x = x_ref[...].astype(jnp.float32)
    k = x.shape[1]
    col = jax.lax.broadcasted_iota(jnp.int32, (1, k), 1)
    scale = jnp.where(col < a_dim, 1.0, inv_sigma)              # (1, K) f32
    x_scaled = (x * scale).astype(w_ref.dtype)

    acc = jnp.dot(x_scaled, w_ref[...], preferred_element_type=jnp.float32)
    o_ref[...] = (acc + b_ref[...]).astype(o_ref.dtype)


# ---------------------------------------------------------------------------
# Parameter construction (deterministic, mimics module __init__)
# ---------------------------------------------------------------------------
def _l2_normalize(v, eps=1e-12):
    return v / jnp.maximum(jnp.linalg.norm(v), eps)


def init_params(key, in_features, out_features, a_dim=2, *,
                compute_dtype=jnp.float32):
    """compute_dtype: dtype of the fused weight fed to the MXU
    (jnp.bfloat16 recommended on v6e/v7x; no per-forward cast pass)."""
    in_s = in_features - a_dim
    k1, k2, k3, k4, k5 = jax.random.split(key, 5)
    bs = 1.0 / jnp.sqrt(in_s)
    ba = 1.0 / jnp.sqrt(a_dim)
    s_weight = jax.random.uniform(k1, (out_features, in_s), jnp.float32, -bs, bs)
    s_bias = jax.random.uniform(k2, (out_features,), jnp.float32, -bs, bs)
    a_weight = jax.random.uniform(k3, (out_features, a_dim), jnp.float32, -ba, ba)

    # spectral_norm u/v buffers: normalized gaussians + the 15 power iterations
    # PyTorch runs at parametrization-registration time.
    u = _l2_normalize(jax.random.normal(k4, (out_features,), jnp.float32))
    v = _l2_normalize(jax.random.normal(k5, (in_s,), jnp.float32))
    for _ in range(15):
        u = _l2_normalize(s_weight @ v)
        v = _l2_normalize(s_weight.T @ u)

    # Pre-transposed / pre-concatenated weight in [in, out] layout, already in
    # the compute dtype; bias as (1, out) f32.  No per-forward HBM transpose,
    # reshape, or astype pass.
    w_full = jnp.concatenate([a_weight.T, s_weight.T], axis=0).astype(compute_dtype)
    bias2d = s_bias.reshape(1, -1)

    return {
        "a_dim": a_dim,
        "w_full": w_full,       # (in, out): rows [0:a_dim)=Wa^T, rest=Ws^T (raw)
        "bias": bias2d,         # (1, out) f32
        "u": u, "v": v,         # spectral_norm buffers
        # f32 originals: used for the power iteration and the pure-JAX reference
        "a_weight": a_weight, "s_weight": s_weight, "s_bias": s_bias,
    }


# ---------------------------------------------------------------------------
# Forward wrapper
# ---------------------------------------------------------------------------
def custom_spectral_linear(x, params, n_power_iterations=1, *,
                           tm_target=512, tn_target=1024,
                           w_resident_bytes=8 * 1024 * 1024):
    a_dim = params["a_dim"]
    w_full = params["w_full"]            # (in, out), compute dtype
    bias = params["bias"]                # (1, out) f32
    ws = params["s_weight"]              # (out, in_s) f32 -- power iteration in f32
    u, v = params["u"], params["v"]

    # Training-mode spectral_norm: n power iterations, then
    #   sigma = u^T Ws v == ||Ws^T u||   (exact, since v = normalize(Ws^T u))
    # -> only TWO mat-vec passes over Ws per iteration, no third sigma pass.
    if n_power_iterations > 0:
        sigma = None
        for _ in range(n_power_iterations):
            u = _l2_normalize(ws @ v)
            v_raw = ws.T @ u
            sigma = jnp.linalg.norm(v_raw)
            v = v_raw / jnp.maximum(sigma, 1e-12)
    else:                                # eval-mode: use stored u/v as-is
        sigma = jnp.dot(u, ws @ v)
    sigma = sigma.reshape(1, 1).astype(jnp.float32)
    # TODO(synk): updated u/v buffers are not persisted back into params.

    B, in_f = x.shape
    out_f = w_full.shape[1]
    out_dtype = x.dtype
    x_item = jnp.dtype(x.dtype).itemsize
    w_item = jnp.dtype(w_full.dtype).itemsize
    o_item = jnp.dtype(out_dtype).itemsize

    # ---- batch (M) tile: multiple of 8, or the full (possibly small) batch --
    tm = B if B <= tm_target else tm_target
    n_bt = pl.cdiv(B, tm)

    w_bytes = in_f * out_f * w_item
    if w_bytes <= w_resident_bytes:
        # ---- Mode A: whole W (+bias) resident in VMEM; grid over batch only.
        tn = out_f
        if n_bt == 1 and B >= 16:        # keep both v7x TensorCores busy
            tm = _round_up(pl.cdiv(B, 2), 8)
            n_bt = pl.cdiv(B, tm)
        grid = (n_bt,)
        in_specs = [
            pl.BlockSpec((1, 1), lambda i: (0, 0),
                         memory_space=pltpu.MemorySpace.SMEM),
            pl.BlockSpec((tm, in_f), lambda i: (i, 0)),
            pl.BlockSpec((in_f, out_f), lambda i: (0, 0)),   # constant -> 1 DMA
            pl.BlockSpec((1, out_f), lambda i: (0, 0)),
        ]
        out_spec = pl.BlockSpec((tm, out_f), lambda i: (i, 0))
        dims = ("parallel",)
        x_hbm_reads = 1
    else:
        # ---- Mode B: W tiled over out features; batch is the INNERMOST grid
        # axis so each W tile's block index is constant across consecutive
        # steps (DMA'd once per out tile, reused across all batch tiles).
        tn = tn_target if out_f > tn_target else out_f        # multiple of 128
        n_nt = pl.cdiv(out_f, tn)
        if n_nt == 1 and n_bt == 1 and B >= 16:
            tm = _round_up(pl.cdiv(B, 2), 8)
            n_bt = pl.cdiv(B, tm)
        grid = (n_nt, n_bt)
        in_specs = [
            pl.BlockSpec((1, 1), lambda j, i: (0, 0),
                         memory_space=pltpu.MemorySpace.SMEM),
            pl.BlockSpec((tm, in_f), lambda j, i: (i, 0)),
            pl.BlockSpec((in_f, tn), lambda j, i: (0, j)),
            pl.BlockSpec((1, tn), lambda j, i: (0, j)),
        ]
        out_spec = pl.BlockSpec((tm, tn), lambda j, i: (i, j))
        dims = ("parallel", "parallel")
        x_hbm_reads = n_nt

    # VMEM limit derived from the actual working set (double-buffer + slack),
    # not a blanket 48 MiB -> leaves headroom on v7x's 64 MiB VMEM.
    tile_bytes = (tm * in_f * x_item + in_f * tn * w_item
                  + tn * 4 + tm * tn * o_item)
    vmem_limit = int(min(max(4 * tile_bytes, 4 << 20), 96 << 20))

    cost = pl.CostEstimate(
        flops=2 * B * in_f * out_f,
        transcendentals=0,
        bytes_accessed=(x_hbm_reads * B * in_f * x_item   # x re-read per out tile
                        + in_f * out_f * w_item           # W read exactly once
                        + out_f * 4                        # bias
                        + B * out_f * o_item + 4),         # output + sigma
    )

    return pl.pallas_call(
        functools.partial(_spectral_linear_kernel, a_dim=a_dim),
        out_shape=jax.ShapeDtypeStruct((B, out_f), out_dtype),
        grid=grid,
        in_specs=in_specs,
        out_specs=out_spec,
        compiler_params=pltpu.CompilerParams(
            dimension_semantics=dims,
            vmem_limit_bytes=vmem_limit,
        ),
        cost_estimate=cost,
    )(sigma, x, w_full, bias)


# ---------------------------------------------------------------------------
# Pure-JAX reference for verification (PyTorch semantics, f32 throughout)
# ---------------------------------------------------------------------------
def reference(x, params, n_power_iterations=1):
    a_dim = params["a_dim"]
    ws = params["s_weight"]                     # (out, in_s)
    u, v = params["u"], params["v"]
    for _ in range(n_power_iterations):
        u = _l2_normalize(ws @ v)
        v = _l2_normalize(ws.T @ u)
    sigma = jnp.dot(u, ws @ v)
    a = x[:, :a_dim] @ params["a_weight"].T
    s = x[:, a_dim:] @ (ws / sigma).T + params["s_bias"]
    return a + s


if __name__ == "__main__":
    key = jax.random.PRNGKey(0)
    k1, k2, k3, k4 = jax.random.split(key, 4)

    # ---- small shapes consistent with the module forward --------------------
    B, in_features, out_features, a_dim = 2, 32, 32, 2
    params = init_params(k1, in_features, out_features, a_dim)
    x = jax.random.normal(k2, (B, in_features), jnp.float32)

    y = jax.block_until_ready(custom_spectral_linear(x, params))
    y_ref = reference(x, params)
    assert y.shape == (B, out_features)
    assert jnp.allclose(y, y_ref, atol=1e-4, rtol=1e-4), "small-shape mismatch"

    # ---- larger shapes: f32, full-weight-resident (Mode A), grid over batch --
    B2, in2, out2 = 512, 258, 1024              # Mode A: tm=256, grid=(2,)
    params2 = init_params(k3, in2, out2, a_dim)
    x2 = jax.random.normal(k4, (B2, in2), jnp.float32)

    y2 = jax.block_until_ready(custom_spectral_linear(x2, params2))
    y2_ref = reference(x2, params2)
    assert y2.shape == (B2, out2)
    assert jnp.allclose(y2, y2_ref, atol=2e-3, rtol=2e-3), "Mode-A mismatch"

    # ---- same shapes forced through the tiled-W (Mode B) 2-D grid -----------
    y2b = jax.block_until_ready(
        custom_spectral_linear(x2, params2, tn_target=512, w_resident_bytes=0))
    assert jnp.allclose(y2b, y2_ref, atol=2e-3, rtol=2e-3), "Mode-B mismatch"

    # ---- bf16 MXU inputs (recommended default on v6e/v7x) -------------------
    params2_bf16 = init_params(k3, in2, out2, a_dim, compute_dtype=jnp.bfloat16)
    y2c = jax.block_until_ready(custom_spectral_linear(x2, params2_bf16))
    assert jnp.allclose(y2c, y2_ref, atol=5e-2, rtol=5e-2), "bf16 mismatch"

    print("KERNEL_OK")
</pallas_src>

<mosaic_0001>
module attributes {stable_mosaic.version = 11 : i64} {
  func.func @_spectral_linear_kernel(%arg0: i32, %arg1: memref<1x1xf32, #tpu.memory_space<smem>>, %arg2: memref<2x32xf32, #tpu.memory_space<vmem>>, %arg3: memref<32x32xf32, #tpu.memory_space<vmem>>, %arg4: memref<1x32xf32, #tpu.memory_space<vmem>>, %arg5: memref<2x32xf32, #tpu.memory_space<vmem>>) attributes {dimension_semantics = [#tpu.dimension_semantics<parallel>], iteration_bounds = array<i64: 1>, scalar_prefetch = 0 : i64, scratch_operands = 0 : i64, tpu.core_type = #tpu.core_type<tc>, window_params = [{transform_indices = @transform_0, window_bounds = array<i64: 1, 1>}, {transform_indices = @transform_1, window_bounds = array<i64: 2, 32>}, {pipeline_mode = #tpu.pipeline_mode<synchronous>, transform_indices = @transform_2, window_bounds = array<i64: 32, 32>}, {pipeline_mode = #tpu.pipeline_mode<synchronous>, transform_indices = @transform_3, window_bounds = array<i64: 1, 32>}, {transform_indices = @transform_4, window_bounds = array<i64: 2, 32>}]} {
    %c0 = arith.constant 0 : index
    %c0_0 = arith.constant 0 : index
    %0 = memref.load %arg1[%c0, %c0_0] : memref<1x1xf32, #tpu.memory_space<smem>>
    %cst = arith.constant 9.99999996E-13 : f32
    %1 = arith.maximumf %0, %cst : f32
    %cst_1 = arith.constant 1.000000e+00 : f32
    %2 = arith.divf %cst_1, %1 : f32
    %c0_2 = arith.constant 0 : index
    %c0_3 = arith.constant 0 : index
    %3 = vector.load %arg2[%c0_2, %c0_3] : memref<2x32xf32, #tpu.memory_space<vmem>>, vector<2x32xf32>
    %4 = tpu.iota {dimensions = array<i32: 1>} : vector<1x32xi32>
    %c2_i32 = arith.constant 2 : i32
    %5 = vector.broadcast %c2_i32 : i32 to vector<1x32xi32>
    %6 = arith.cmpi slt, %4, %5 : vector<1x32xi32>
    %cst_4 = arith.constant 1.000000e+00 : f32
    %7 = vector.broadcast %cst_4 : f32 to vector<1x32xf32>
    %8 = vector.broadcast %2 : f32 to vector<1x32xf32>
    %9 = arith.select %6, %7, %8 : vector<1x32xi1>, vector<1x32xf32>
    %10 = vector.broadcast %9 : vector<1x32xf32> to vector<2x32xf32>
    %11 = arith.mulf %3, %10 : vector<2x32xf32>
    %c0_5 = arith.constant 0 : index
    %c0_6 = arith.constant 0 : index
    %12 = vector.load %arg3[%c0_5, %c0_6] : memref<32x32xf32, #tpu.memory_space<vmem>>, vector<32x32xf32>
    %cst_7 = arith.constant dense<0.000000e+00> : vector<2x32xf32>
    %13 = tpu.matmul %11, %12, %cst_7 {dimension_numbers = #tpu.dot_dimension_numbers<[1], [0], [0], [1], [0, 0, 1, 1], [], []>} : vector<2x32xf32>, vector<32x32xf32>, vector<2x32xf32> -> vector<2x32xf32>
    %c0_8 = arith.constant 0 : index
    %c0_9 = arith.constant 0 : index
    %14 = vector.load %arg4[%c0_8, %c0_9] : memref<1x32xf32, #tpu.memory_space<vmem>>, vector<1x32xf32>
    %15 = vector.broadcast %14 : vector<1x32xf32> to vector<2x32xf32>
    %16 = arith.addf %13, %15 : vector<2x32xf32>
    %c0_10 = arith.constant 0 : index
    %c0_11 = arith.constant 0 : index
    %17 = vector.load %arg5[%c0_10, %c0_11] : memref<2x32xf32, #tpu.memory_space<vmem>>, vector<2x32xf32>
    tpu.vector_store %arg5[%c0_10, %c0_11], %16 {strides = array<i32>} : memref<2x32xf32, #tpu.memory_space<vmem>>, vector<2x32xf32>,
    return
  }
  func.func @transform_0(%arg0: i32) -> (i32, i32) {
    %c0_i32 = arith.constant 0 : i32
    %c0_i32_0 = arith.constant 0 : i32
    %c0_i32_1 = arith.constant 0 : i32
    return %c0_i32, %c0_i32_0 : i32, i32
  }
  func.func @transform_1(%arg0: i32) -> (i32, i32) {
    %c0_i32 = arith.constant 0 : i32
    %c0_i32_0 = arith.constant 0 : i32
    return %arg0, %c0_i32 : i32, i32
  }
  func.func @transform_2(%arg0: i32) -> (i32, i32) {
    %c0_i32 = arith.constant 0 : i32
    %c0_i32_0 = arith.constant 0 : i32
    %c0_i32_1 = arith.constant 0 : i32
    return %c0_i32, %c0_i32_0 : i32, i32
  }
  func.func @transform_3(%arg0: i32) -> (i32, i32) {
    %c0_i32 = arith.constant 0 : i32
    %c0_i32_0 = arith.constant 0 : i32
    %c0_i32_1 = arith.constant 0 : i32
    return %c0_i32, %c0_i32_0 : i32, i32
  }
  func.func @transform_4(%arg0: i32) -> (i32, i32) {
    %c0_i32 = arith.constant 0 : i32
    %c0_i32_0 = arith.constant 0 : i32
    return %arg0, %c0_i32 : i32, i32
  }
}

</mosaic_0001>

<llo_original>
// kernel: tpu_custom_call.1
$region0: #{tpu_custom_call.1}
  #allocation0 [shape = 'u32[]', space=smem, size = 0x4, offset = 0x4, fixed_abs, tag = 'smem constant byte address 0x4 - core index']
  #allocation1 [shape = 'u32[144,128]{1,0:T(1,128)}', space=vmem, size = 0x12000, scoped, tag = 'internal scratch']
  #allocation2 [shape = 'f32[1,1]{1,0:T(1,128)S(6)}', space=smem, size = 0x200, scoped, tag = 'scoped memory for tpu_custom_call.1']
  %s0 = inlined_call_operand.<no memory space> [shape: f32[1,1], index: 0, kind: input, shape index: {}]
  %s1 = inlined_call_operand.vmem [shape: f32[2,32], index: 1, kind: input, shape index: {}]
  %s2 = inlined_call_operand.hbm [shape: f32[32,32], index: 2, kind: input, shape index: {}]
  %s3 = inlined_call_operand.vmem [shape: f32[1,32], index: 3, kind: input, shape index: {}]
  %s4 = inlined_call_operand.hbm [shape: f32[2,32], index: 4, kind: output, shape index: {}]
  %s5 = sld [smem:[#allocation0]]
  $region30: #{tpu_custom_call.1} parent=0
    _
  %s7 = ssub.s32 1, %s5
  %s8 = scalar_select 0, %s7, %s5
  %9 = sst [smem:[#allocation2]] %s0
  $region1: #{tpu_custom_call.1} parent=0
    #allocation3 [shape = 'u8[16384]{0}', space=vmem, size = 0x4000, scoped, tag = 'input window, operand 2, single buffered']
    #allocation4 [shape = 's32[1]{0}', space=sflag, size = 0x4, scoped, tag = 'scoped memory for tpu_custom_call.1']
    #allocation5 [shape = 's32[1]{0}', space=sflag, size = 0x4, scoped, tag = 'scoped memory for tpu_custom_call.1']
    #allocation6 [shape = 'u8[1024]{0}', space=vmem, size = 0x400, scoped, tag = 'output window, operand 0, single buffered']
    %10 = vsyncpa [#allocation4], 0
    %11 = vsyncpa [#allocation5], 0
    // Predicated region
    $region2: #{tpu_custom_call.1} parent=1 // pred_check
      _
    $region3: #{tpu_custom_call.1} parent=1 // pred_check_branch
      %13 = sbr.rel (0) target = $region5
    $region4: #{tpu_custom_call.1} parent=1 // pred_region
      _
    $region5: #{tpu_custom_call.1} parent=1 // pred_fallthru
      _
    // Predicated region
    $region6: #{tpu_custom_call.1} parent=1 // pred_check
      _
    $region7: #{tpu_custom_call.1} parent=1 // pred_check_branch
      %15 = sbr.rel (0) target = $region9
    $region8: #{tpu_custom_call.1} parent=1 // pred_region
      _
    $region9: #{tpu_custom_call.1} parent=1 // pred_fallthru
      _
    // Predicated region
    $region10: #{tpu_custom_call.1} parent=1 // pred_check
      _
    $region11: #{tpu_custom_call.1} parent=1 // pred_check_branch
      %17 = sbr.rel (0) target = $region13
    $region12: #{tpu_custom_call.1} parent=1 // pred_region
      %s19 = ssub.s32 512, 512
      %20 = vsyncadd [#allocation4], %s19
      %s21 = sshll.u32 [#allocation3], 4
      %s22 = int_to_ptr.vmem [resolvable:$true] %s21
      %27 = dma.hbm_to_vmem [thread:$0]  %s2, 512, %s22, [#allocation4], 128, 128, 8
    $region13: #{tpu_custom_call.1} parent=1 // pred_fallthru
      _
    // Predicated region
    $region14: #{tpu_custom_call.1} parent=1 // pred_check
      _
    $region15: #{tpu_custom_call.1} parent=1 // pred_check_branch
      %29 = sbr.rel (0) target = $region17
    $region16: #{tpu_custom_call.1} parent=1 // pred_region
      _
    $region17: #{tpu_custom_call.1} parent=1 // pred_fallthru
      _
    // Predicated region
    $region18: #{tpu_custom_call.1} parent=1 // pred_check
      _
    $region19: #{tpu_custom_call.1} parent=1 // pred_check_branch
      %31 = sbr.rel (0) target = $region21
    $region20: #{tpu_custom_call.1} parent=1 // pred_region
      %32 = dma.done [#allocation4], 512
    $region21: #{tpu_custom_call.1} parent=1 // pred_fallthru
      _
    %s33 = sld [smem:[#allocation2]]
    %s34 = smax.f32 %s33, 1e-12
    %v35 = vstv %s34
    %v36 = vrcp.pop %v35
    %s37 = vtos %v36
    %v38 = vld [vmem:[%s1] sm:$0x3]
    %v39 = vlaneseq
    %v40 = vand.u32 %v39, 127
    %vm41 = vcmp.lt.s32.totalorder %v40, 2
    %v42 = vstv %s37
    %v43 = vsel %vm41, 1.0, %v42
    %v44 = vmul.f32 %v38, %v43
    %v45 = vld [vmem:[#allocation3] sm:$0xff]
    %v46 = vld [vmem:[#allocation3 + $0x8] sm:$0xff]
    %v47 = vld [vmem:[#allocation3 + $0x10] sm:$0xff]
    %v48 = vld [vmem:[#allocation3 + $0x18] sm:$0xff]
    %v49 = vld [vmem:[%s3] sm:$0x1]
    %v51 = vlaneseq
    %v52 = vshrl.u32 %v51, 7
    %v53 = vsub.s32 0, %v52
    %v54 = vrot.slane %v49, %v53
    %vm56 = vcmask 261120
    %v58 = vsel %vm56, %v44, 0
    %60 = vmatprep.subr.mxu0 0.0
    %61 = vmatpush1.msra.mxu0 0.0
    %62 = vmatprep.subr.mxu0 0.0
    %63 = vmatpush1.msra.mxu0 0.0
    %64 = vmatprep.subr.mxu0 0.0
    %65 = vmatpush1.msra.mxu0 0.0
    %66 = vmatprep.subr.mxu0 0.0
    %67 = vmatpush1.msra.mxu0 0.0
    %68 = vmatprep.subr.mxu0 0.0
    %69 = vmatpush1.msra.mxu0 0.0
    %70 = vmatprep.subr.mxu0 0.0
    %71 = vmatpush1.msra.mxu0 0.0
    %72 = vmatprep.subr.mxu0 0.0
    %73 = vmatpush1.msra.mxu0 0.0
    %74 = vmatprep.subr.mxu0 0.0
    %75 = vmatpush1.msra.mxu0 0.0
    %76 = vmatprep.subr.mxu0 0.0
    %77 = vmatpush1.msra.mxu0 0.0
    %78 = vmatprep.subr.mxu0 0.0
    %79 = vmatpush1.msra.mxu0 0.0
    %80 = vmatprep.subr.mxu0 0.0
    %81 = vmatpush1.msra.mxu0 0.0
    %82 = vmatprep.subr.mxu0 0.0
    %83 = vmatpush1.msra.mxu0 0.0
    %84 = vmatprep.subr.mxu0 0.0
    %85 = vmatpush1.msra.mxu0 %v48
    %86 = vmatprep.subr.mxu0 0.0
    %87 = vmatpush1.msra.mxu0 %v47
    %88 = vmatprep.subr.mxu0 0.0
    %89 = vmatpush1.msra.mxu0 %v46
    %90 = vmatprep.subr.mxu0 0.0
    %91 = vmatpush1.msra.mxu0 %v45
    %92 = vmatprep.subr.mxu0 0.0
    %93 = vmatpush2.msra.mxu0 0.0
    %94 = vmatprep.subr.mxu0 0.0
    %95 = vmatpush2.msra.mxu0 0.0
    %96 = vmatprep.subr.mxu0 0.0
    %97 = vmatpush2.msra.mxu0 0.0
    %98 = vmatprep.subr.mxu0 0.0
    %99 = vmatpush2.msra.mxu0 0.0
    %100 = vmatprep.subr.mxu0 0.0
    %101 = vmatpush2.msra.mxu0 0.0
    %102 = vmatprep.subr.mxu0 0.0
    %103 = vmatpush2.msra.mxu0 0.0
    %104 = vmatprep.subr.mxu0 0.0
    %105 = vmatpush2.msra.mxu0 0.0
    %106 = vmatprep.subr.mxu0 0.0
    %107 = vmatpush2.msra.mxu0 0.0
    %108 = vmatprep.subr.mxu0 0.0
    %109 = vmatpush2.msra.mxu0 0.0
    %110 = vmatprep.subr.mxu0 0.0
    %111 = vmatpush2.msra.mxu0 0.0
    %112 = vmatprep.subr.mxu0 0.0
    %113 = vmatpush2.msra.mxu0 0.0
    %114 = vmatprep.subr.mxu0 0.0
    %115 = vmatpush2.msra.mxu0 0.0
    %116 = vmatprep.subr.mxu0 0.0
    %117 = vmatpush2.msra.mxu0 0.0
    %118 = vmatprep.subr.mxu0 0.0
    %119 = vmatpush2.msra.mxu0 0.0
    %120 = vmatprep.subr.mxu0 0.0
    %121 = vmatpush2.msra.mxu0 0.0
    %122 = vmatprep.subr.mxu0 0.0
    %123 = vmatpush2.msra.mxu0 0.0
    %124 = vmatprep.mubr.f32.mxu0 0.0
    %125 = vmatmul.mubr.f32.gmra.mxu0 %v58
    %v126 = vpop.f32.mrf.mxu0
    %v127 = vadd.f32 %v54, %v126
    %v128 = vpop.f32.mrf.mxu0
    %129 = vdwg.mxu0
    %vm130 = vcmask 254976
    %131 = vst.msk [vmem:[#allocation6] sm:$0x3] %vm130, %v127
    // Predicated region
    $region22: #{tpu_custom_call.1} parent=1 // pred_check
      _
    $region23: #{tpu_custom_call.1} parent=1 // pred_check_branch
      %133 = sbr.rel (0) target = $region25
    $region24: #{tpu_custom_call.1} parent=1 // pred_region
      %s135 = ssub.s32 32, 32
      %136 = vsyncadd [#allocation5], %s135
      %s138 = sshll.u32 [#allocation6], 4
      %s139 = int_to_ptr.vmem [resolvable:$true] %s138
      %141 = dma.vmem_to_hbm [thread:$0]  %s139, 32, %s4, [#allocation5]
    $region25: #{tpu_custom_call.1} parent=1 // pred_fallthru
      _
    // Predicated region
    $region26: #{tpu_custom_call.1} parent=1 // pred_check
      _
    $region27: #{tpu_custom_call.1} parent=1 // pred_check_branch
      %143 = sbr.rel (0) target = $region29
    $region28: #{tpu_custom_call.1} parent=1 // pred_region
      %144 = dma.done [#allocation5], 32
    $region29: #{tpu_custom_call.1} parent=1 // pred_fallthru
      _
    %145 = vsyncpa [#allocation4], 1
    %146 = vsyncpa [#allocation5], 1

</llo_original>
